<compile_context>
chip_gen: v7x
topology: tpu7x:2x2x1
jax: 0.10.0
libtpu: 0.0.40
codegen_flags: <defaults>
</compile_context>

<pallas_src>
import jax
import jax.numpy as jnp
from jax import lax
from jax.experimental import pallas as pl
from jax.experimental.pallas import tpu as pltpu


def _round_up(x: int, m: int) -> int:
    return ((x + m - 1) // m) * m


def mlp_kernel(x_ref,
               w1_ref, b1_ref,
               w2_ref, b2_ref,
               w3_ref, b3_ref,
               w4_ref, b4_ref,
               o_ref):
    # x_ref: [TILE_B, 8] native row-major batch tile (contiguous DMA).
    x = x_ref[...]                                           # f32

    # Layer 1: [32, TILE_B] = W1 @ x^T.  The transposed-RHS dot_general performs
    # the native -> lane-dense orientation swap on-chip (f32 operands; K=8, so
    # this layer is a small fraction of the total MXU work).
    h = lax.dot_general(
        w1_ref[...], x,
        dimension_numbers=(((1,), (1,)), ((), ())),
        preferred_element_type=jnp.float32) + b1_ref[...]
    h = jnp.maximum(h, 0.0)                                  # [32, TILE_B] f32

    # Layers 2-3: bf16 MXU operands, f32 accumulate; bias/ReLU in f32.
    h = jnp.dot(w2_ref[...], h.astype(jnp.bfloat16),
                preferred_element_type=jnp.float32) + b2_ref[...]
    h = jnp.maximum(h, 0.0)                                  # [32, TILE_B]

    h = jnp.dot(w3_ref[...], h.astype(jnp.bfloat16),
                preferred_element_type=jnp.float32) + b3_ref[...]
    h = jnp.maximum(h, 0.0)                                  # [32, TILE_B]

    # Layer 4 (no activation): [4, TILE_B], lane-dense store.
    out = jnp.dot(w4_ref[...], h.astype(jnp.bfloat16),
                  preferred_element_type=jnp.float32) + b4_ref[...]
    o_ref[...] = out.astype(o_ref.dtype)


def _choose_tile(batch: int, tile_b: int) -> int:
    """Pick the batch-tile size.

    Small batches: one exact-size tile (no padding at all).
    Larger batches: at least two tiles (v7x megacore gets work on the
    'parallel' axis), each a multiple of 128 lanes, capped near `tile_b`.
    """
    if batch <= 256:
        return batch
    tile_b = _round_up(tile_b, 128)
    num_tiles = max(2, pl.cdiv(batch, tile_b))
    return min(tile_b, _round_up(pl.cdiv(batch, num_tiles), 128))


def deep_q_forward(state, params, *, tile_b: int = 16384):
    """state: [batch, 8] float32. Returns Q-values: [batch, 4] float32."""
    (w1, b1), (w2, b2), (w3, b3), (w4, b4) = params
    batch, in_dim = state.shape
    out_dim = w4.shape[0]

    tb = _choose_tile(batch, tile_b)
    num_tiles = pl.cdiv(batch, tb)
    padded_batch = num_tiles * tb

    x = state
    if padded_batch != batch:
        # Only when the tile does not divide the batch. Padded rows compute
        # ReLU(bias) garbage that the final slice discards.
        x = jnp.pad(x, ((0, padded_batch - batch), (0, 0)))

    # bf16 MXU operands for the three K=32 layers (cast once; tiny arrays).
    # Layer-1 weight and all biases stay f32.
    w2b = w2.astype(jnp.bfloat16)
    w3b = w3.astype(jnp.bfloat16)
    w4b = w4.astype(jnp.bfloat16)

    def resident(arr):
        # Full-array block + constant index map: one prologue DMA, then
        # VMEM-resident across every grid step.
        return pl.BlockSpec(arr.shape, lambda i: (0, 0))

    q_t = pl.pallas_call(
        mlp_kernel,
        out_shape=jax.ShapeDtypeStruct((out_dim, padded_batch), jnp.float32),
        grid=(num_tiles,),
        in_specs=[
            pl.BlockSpec((tb, in_dim), lambda i: (i, 0)),   # native x tile
            resident(w1), resident(b1),
            resident(w2b), resident(b2),
            resident(w3b), resident(b3),
            resident(w4b), resident(b4),
        ],
        out_specs=pl.BlockSpec((out_dim, tb), lambda i: (0, i)),
        compiler_params=pltpu.CompilerParams(
            dimension_semantics=("parallel",)),
    )(x, w1, b1, w2b, b2, w3b, b3, w4b, b4)

    # Kernel emits Q^T ([4, batch]); one small transpose restores the module's
    # [batch, 4] output contract (16 B/sample — the big input-side transpose and
    # pad passes from the previous version are gone).
    return jnp.transpose(q_t[:, :batch])


def init_params(key):
    """PyTorch Linear default init: U(-1/sqrt(fan_in), +1/sqrt(fan_in)).

    Weights are stored PyTorch-native [out_features, in_features]; biases as
    [out_features, 1] (2-D, broadcast over the lane/batch axis in the kernel).
    """
    dims = [(8, 32), (32, 32), (32, 32), (32, 4)]
    params = []
    for fan_in, fan_out in dims:
        key, kw, kb = jax.random.split(key, 3)
        bound = 1.0 / jnp.sqrt(jnp.float32(fan_in))
        w = jax.random.uniform(kw, (fan_out, fan_in), jnp.float32, -bound, bound)
        b = jax.random.uniform(kb, (fan_out, 1), jnp.float32, -bound, bound)
        params.append((w, b))
    return params


def reference_forward(state, params):
    """Pure-f32 reference (PyTorch forward semantics)."""
    (w1, b1), (w2, b2), (w3, b3), (w4, b4) = params
    h = jnp.maximum(state @ w1.T + b1.T, 0.0)
    h = jnp.maximum(h @ w2.T + b2.T, 0.0)
    h = jnp.maximum(h @ w3.T + b3.T, 0.0)
    return h @ w4.T + b4.T


def reference_forward_mixed(state, params):
    """Matches the kernel's numerics: layer 1 f32, layers 2-4 bf16 x bf16 -> f32."""
    (w1, b1), (w2, b2), (w3, b3), (w4, b4) = params

    def lin_bf16(h, w, b):
        return jnp.dot(h.astype(jnp.bfloat16), w.astype(jnp.bfloat16).T,
                       preferred_element_type=jnp.float32) + b.T

    h = jnp.maximum(state @ w1.T + b1.T, 0.0)
    h = jnp.maximum(lin_bf16(h, w2, b2), 0.0)
    h = jnp.maximum(lin_bf16(h, w3, b3), 0.0)
    return lin_bf16(h, w4, b4)


if __name__ == "__main__":
    key = jax.random.PRNGKey(0)
    key, kx1, kx2, kx3 = jax.random.split(key, 4)
    params = init_params(key)

    def check(batch, kx, **kw):
        state = jax.random.normal(kx, (batch, 8), jnp.float32)
        q = jax.block_until_ready(deep_q_forward(state, params, **kw))
        assert q.shape == (batch, 4), q.shape
        ref_mixed = reference_forward_mixed(state, params)
        ref_f32 = reference_forward(state, params)
        # Tight-ish check against the bf16-matched reference, loose sanity check
        # against the pure-f32 reference (bf16 matmul operands per review).
        assert jnp.allclose(q, ref_mixed, atol=2e-2, rtol=2e-2), \
            float(jnp.max(jnp.abs(q - ref_mixed)))
        assert jnp.allclose(q, ref_f32, atol=1e-1, rtol=1e-1), \
            float(jnp.max(jnp.abs(q - ref_f32)))

    # Small batch: single exact-size tile, no padding, grid of 1.
    check(8, kx1)
    # Non-multiple batch with a small explicit tile: 3-step grid + pad/slice path.
    check(300, kx2, tile_b=128)
    # Medium batch, default tile: splits into 2 tiles (v7x two-TensorCore path).
    check(1024, kx3)

    print("KERNEL_OK")
</pallas_src>

<mosaic_0001>
module attributes {stable_mosaic.version = 11 : i64} {
  func.func @mlp_kernel(%arg0: i32, %arg1: memref<8x8xf32, #tpu.memory_space<vmem>>, %arg2: memref<32x8xf32, #tpu.memory_space<vmem>>, %arg3: memref<32x1xf32, #tpu.memory_space<vmem>>, %arg4: memref<32x32xbf16, #tpu.memory_space<vmem>>, %arg5: memref<32x1xf32, #tpu.memory_space<vmem>>, %arg6: memref<32x32xbf16, #tpu.memory_space<vmem>>, %arg7: memref<32x1xf32, #tpu.memory_space<vmem>>, %arg8: memref<4x32xbf16, #tpu.memory_space<vmem>>, %arg9: memref<4x1xf32, #tpu.memory_space<vmem>>, %arg10: memref<4x8xf32, #tpu.memory_space<vmem>>) attributes {dimension_semantics = [#tpu.dimension_semantics<parallel>], iteration_bounds = array<i64: 1>, scalar_prefetch = 0 : i64, scratch_operands = 0 : i64, tpu.core_type = #tpu.core_type<tc>, window_params = [{transform_indices = @transform_0, window_bounds = array<i64: 8, 8>}, {pipeline_mode = #tpu.pipeline_mode<synchronous>, transform_indices = @transform_1, window_bounds = array<i64: 32, 8>}, {pipeline_mode = #tpu.pipeline_mode<synchronous>, transform_indices = @transform_2, window_bounds = array<i64: 32, 1>}, {pipeline_mode = #tpu.pipeline_mode<synchronous>, transform_indices = @transform_3, window_bounds = array<i64: 32, 32>}, {pipeline_mode = #tpu.pipeline_mode<synchronous>, transform_indices = @transform_4, window_bounds = array<i64: 32, 1>}, {pipeline_mode = #tpu.pipeline_mode<synchronous>, transform_indices = @transform_5, window_bounds = array<i64: 32, 32>}, {pipeline_mode = #tpu.pipeline_mode<synchronous>, transform_indices = @transform_6, window_bounds = array<i64: 32, 1>}, {pipeline_mode = #tpu.pipeline_mode<synchronous>, transform_indices = @transform_7, window_bounds = array<i64: 4, 32>}, {pipeline_mode = #tpu.pipeline_mode<synchronous>, transform_indices = @transform_8, window_bounds = array<i64: 4, 1>}, {transform_indices = @transform_9, window_bounds = array<i64: 4, 8>}]} {
    %c0 = arith.constant 0 : index
    %c0_0 = arith.constant 0 : index
    %0 = vector.load %arg1[%c0, %c0_0] : memref<8x8xf32, #tpu.memory_space<vmem>>, vector<8x8xf32>
    %c0_1 = arith.constant 0 : index
    %c0_2 = arith.constant 0 : index
    %1 = vector.load %arg2[%c0_1, %c0_2] : memref<32x8xf32, #tpu.memory_space<vmem>>, vector<32x8xf32>
    %cst = arith.constant dense<0.000000e+00> : vector<32x8xf32>
    %2 = tpu.matmul %1, %0, %cst {dimension_numbers = #tpu.dot_dimension_numbers<[1], [1], [0], [0], [0, 0, 1, 0], [], []>} : vector<32x8xf32>, vector<8x8xf32>, vector<32x8xf32> -> vector<32x8xf32>
    %c0_3 = arith.constant 0 : index
    %c0_4 = arith.constant 0 : index
    %3 = vector.load %arg3[%c0_3, %c0_4] : memref<32x1xf32, #tpu.memory_space<vmem>>, vector<32x1xf32>
    %4 = vector.broadcast %3 : vector<32x1xf32> to vector<32x8xf32>
    %5 = arith.addf %2, %4 : vector<32x8xf32>
    %cst_5 = arith.constant 0.000000e+00 : f32
    %6 = vector.broadcast %cst_5 : f32 to vector<32x8xf32>
    %7 = arith.maximumf %5, %6 : vector<32x8xf32>
    %c0_6 = arith.constant 0 : index
    %c0_7 = arith.constant 0 : index
    %8 = vector.load %arg4[%c0_6, %c0_7] : memref<32x32xbf16, #tpu.memory_space<vmem>>, vector<32x32xbf16>
    %9 = arith.truncf %7 : vector<32x8xf32> to vector<32x8xbf16>
    %cst_8 = arith.constant dense<0.000000e+00> : vector<32x8xf32>
    %10 = tpu.matmul %8, %9, %cst_8 {dimension_numbers = #tpu.dot_dimension_numbers<[1], [0], [0], [1], [0, 0, 1, 1], [], []>} : vector<32x32xbf16>, vector<32x8xbf16>, vector<32x8xf32> -> vector<32x8xf32>
    %c0_9 = arith.constant 0 : index
    %c0_10 = arith.constant 0 : index
    %11 = vector.load %arg5[%c0_9, %c0_10] : memref<32x1xf32, #tpu.memory_space<vmem>>, vector<32x1xf32>
    %12 = vector.broadcast %11 : vector<32x1xf32> to vector<32x8xf32>
    %13 = arith.addf %10, %12 : vector<32x8xf32>
    %cst_11 = arith.constant 0.000000e+00 : f32
    %14 = vector.broadcast %cst_11 : f32 to vector<32x8xf32>
    %15 = arith.maximumf %13, %14 : vector<32x8xf32>
    %c0_12 = arith.constant 0 : index
    %c0_13 = arith.constant 0 : index
    %16 = vector.load %arg6[%c0_12, %c0_13] : memref<32x32xbf16, #tpu.memory_space<vmem>>, vector<32x32xbf16>
    %17 = arith.truncf %15 : vector<32x8xf32> to vector<32x8xbf16>
    %cst_14 = arith.constant dense<0.000000e+00> : vector<32x8xf32>
    %18 = tpu.matmul %16, %17, %cst_14 {dimension_numbers = #tpu.dot_dimension_numbers<[1], [0], [0], [1], [0, 0, 1, 1], [], []>} : vector<32x32xbf16>, vector<32x8xbf16>, vector<32x8xf32> -> vector<32x8xf32>
    %c0_15 = arith.constant 0 : index
    %c0_16 = arith.constant 0 : index
    %19 = vector.load %arg7[%c0_15, %c0_16] : memref<32x1xf32, #tpu.memory_space<vmem>>, vector<32x1xf32>
    %20 = vector.broadcast %19 : vector<32x1xf32> to vector<32x8xf32>
    %21 = arith.addf %18, %20 : vector<32x8xf32>
    %cst_17 = arith.constant 0.000000e+00 : f32
    %22 = vector.broadcast %cst_17 : f32 to vector<32x8xf32>
    %23 = arith.maximumf %21, %22 : vector<32x8xf32>
    %c0_18 = arith.constant 0 : index
    %c0_19 = arith.constant 0 : index
    %24 = vector.load %arg8[%c0_18, %c0_19] : memref<4x32xbf16, #tpu.memory_space<vmem>>, vector<4x32xbf16>
    %25 = arith.truncf %23 : vector<32x8xf32> to vector<32x8xbf16>
    %cst_20 = arith.constant dense<0.000000e+00> : vector<4x8xf32>
    %26 = tpu.matmul %24, %25, %cst_20 {dimension_numbers = #tpu.dot_dimension_numbers<[1], [0], [0], [1], [0, 0, 1, 1], [], []>} : vector<4x32xbf16>, vector<32x8xbf16>, vector<4x8xf32> -> vector<4x8xf32>
    %c0_21 = arith.constant 0 : index
    %c0_22 = arith.constant 0 : index
    %27 = vector.load %arg9[%c0_21, %c0_22] : memref<4x1xf32, #tpu.memory_space<vmem>>, vector<4x1xf32>
    %28 = vector.broadcast %27 : vector<4x1xf32> to vector<4x8xf32>
    %29 = arith.addf %26, %28 : vector<4x8xf32>
    %c0_23 = arith.constant 0 : index
    %c0_24 = arith.constant 0 : index
    %30 = vector.load %arg10[%c0_23, %c0_24] : memref<4x8xf32, #tpu.memory_space<vmem>>, vector<4x8xf32>
    tpu.vector_store %arg10[%c0_23, %c0_24], %29 {strides = array<i32>} : memref<4x8xf32, #tpu.memory_space<vmem>>, vector<4x8xf32>,
    return
  }
  func.func @transform_0(%arg0: i32) -> (i32, i32) {
    %c0_i32 = arith.constant 0 : i32
    %c0_i32_0 = arith.constant 0 : i32
    return %arg0, %c0_i32 : i32, i32
  }
  func.func @transform_1(%arg0: i32) -> (i32, i32) {
    %c0_i32 = arith.constant 0 : i32
    %c0_i32_0 = arith.constant 0 : i32
    %c0_i32_1 = arith.constant 0 : i32
    return %c0_i32, %c0_i32_0 : i32, i32
  }
  func.func @transform_2(%arg0: i32) -> (i32, i32) {
    %c0_i32 = arith.constant 0 : i32
    %c0_i32_0 = arith.constant 0 : i32
    %c0_i32_1 = arith.constant 0 : i32
    return %c0_i32, %c0_i32_0 : i32, i32
  }
  func.func @transform_3(%arg0: i32) -> (i32, i32) {
    %c0_i32 = arith.constant 0 : i32
    %c0_i32_0 = arith.constant 0 : i32
    %c0_i32_1 = arith.constant 0 : i32
    return %c0_i32, %c0_i32_0 : i32, i32
  }
  func.func @transform_4(%arg0: i32) -> (i32, i32) {
    %c0_i32 = arith.constant 0 : i32
    %c0_i32_0 = arith.constant 0 : i32
    %c0_i32_1 = arith.constant 0 : i32
    return %c0_i32, %c0_i32_0 : i32, i32
  }
  func.func @transform_5(%arg0: i32) -> (i32, i32) {
    %c0_i32 = arith.constant 0 : i32
    %c0_i32_0 = arith.constant 0 : i32
    %c0_i32_1 = arith.constant 0 : i32
    return %c0_i32, %c0_i32_0 : i32, i32
  }
  func.func @transform_6(%arg0: i32) -> (i32, i32) {
    %c0_i32 = arith.constant 0 : i32
    %c0_i32_0 = arith.constant 0 : i32
    %c0_i32_1 = arith.constant 0 : i32
    return %c0_i32, %c0_i32_0 : i32, i32
  }
  func.func @transform_7(%arg0: i32) -> (i32, i32) {
    %c0_i32 = arith.constant 0 : i32
    %c0_i32_0 = arith.constant 0 : i32
    %c0_i32_1 = arith.constant 0 : i32
    return %c0_i32, %c0_i32_0 : i32, i32
  }
  func.func @transform_8(%arg0: i32) -> (i32, i32) {
    %c0_i32 = arith.constant 0 : i32
    %c0_i32_0 = arith.constant 0 : i32
    %c0_i32_1 = arith.constant 0 : i32
    return %c0_i32, %c0_i32_0 : i32, i32
  }
  func.func @transform_9(%arg0: i32) -> (i32, i32) {
    %c0_i32 = arith.constant 0 : i32
    %c0_i32_0 = arith.constant 0 : i32
    return %c0_i32, %arg0 : i32, i32
  }
}

</mosaic_0001>

<llo_original>
// kernel: tpu_custom_call.1
$region0: #{tpu_custom_call.1}
  #allocation0 [shape = 'u32[]', space=smem, size = 0x4, offset = 0x4, fixed_abs, tag = 'smem constant byte address 0x4 - core index']
  #allocation1 [shape = 'u32[144,128]{1,0:T(1,128)}', space=vmem, size = 0x12000, scoped, tag = 'internal scratch']
  %s0 = inlined_call_operand.vmem [shape: f32[8,8], index: 0, kind: input, shape index: {}]
  %s1 = inlined_call_operand.vmem [shape: f32[32,8], index: 1, kind: input, shape index: {}]
  %s2 = inlined_call_operand.vmem [shape: f32[32,1], index: 2, kind: input, shape index: {}]
  %s3 = inlined_call_operand.vmem [shape: bf16[32,32], index: 3, kind: input, shape index: {}]
  %s4 = inlined_call_operand.vmem [shape: f32[32,1], index: 4, kind: input, shape index: {}]
  %s5 = inlined_call_operand.vmem [shape: bf16[32,32], index: 5, kind: input, shape index: {}]
  %s6 = inlined_call_operand.vmem [shape: f32[32,1], index: 6, kind: input, shape index: {}]
  %s7 = inlined_call_operand.vmem [shape: bf16[4,32], index: 7, kind: input, shape index: {}]
  %s8 = inlined_call_operand.vmem [shape: f32[4,1], index: 8, kind: input, shape index: {}]
  %s9 = inlined_call_operand.hbm [shape: f32[4,8], index: 9, kind: output, shape index: {}]
  %s10 = sld [smem:[#allocation0]]
  $region46: #{tpu_custom_call.1} parent=0
    _
  %s12 = ssub.s32 1, %s10
  %s13 = scalar_select 0, %s12, %s10
  $region1: #{tpu_custom_call.1} parent=0
    #allocation2 [shape = 'u8[2048]{0}', space=vmem, size = 0x800, scoped, tag = 'output window, operand 0, single buffered']
    #allocation3 [shape = 's32[1]{0}', space=sflag, size = 0x4, scoped, tag = 'scoped memory for tpu_custom_call.1']
    %14 = vsyncpa [#allocation3], 0
    // Predicated region
    $region2: #{tpu_custom_call.1} parent=1 // pred_check
      _
    $region3: #{tpu_custom_call.1} parent=1 // pred_check_branch
      %16 = sbr.rel (0) target = $region5
    $region4: #{tpu_custom_call.1} parent=1 // pred_region
      _
    $region5: #{tpu_custom_call.1} parent=1 // pred_fallthru
      _
    // Predicated region
    $region6: #{tpu_custom_call.1} parent=1 // pred_check
      _
    $region7: #{tpu_custom_call.1} parent=1 // pred_check_branch
      %18 = sbr.rel (0) target = $region9
    $region8: #{tpu_custom_call.1} parent=1 // pred_region
      _
    $region9: #{tpu_custom_call.1} parent=1 // pred_fallthru
      _
    // Predicated region
    $region10: #{tpu_custom_call.1} parent=1 // pred_check
      _
    $region11: #{tpu_custom_call.1} parent=1 // pred_check_branch
      %20 = sbr.rel (0) target = $region13
    $region12: #{tpu_custom_call.1} parent=1 // pred_region
      _
    $region13: #{tpu_custom_call.1} parent=1 // pred_fallthru
      _
    // Predicated region
    $region14: #{tpu_custom_call.1} parent=1 // pred_check
      _
    $region15: #{tpu_custom_call.1} parent=1 // pred_check_branch
      %22 = sbr.rel (0) target = $region17
    $region16: #{tpu_custom_call.1} parent=1 // pred_region
      _
    $region17: #{tpu_custom_call.1} parent=1 // pred_fallthru
      _
    // Predicated region
    $region18: #{tpu_custom_call.1} parent=1 // pred_check
      _
    $region19: #{tpu_custom_call.1} parent=1 // pred_check_branch
      %24 = sbr.rel (0) target = $region21
    $region20: #{tpu_custom_call.1} parent=1 // pred_region
      _
    $region21: #{tpu_custom_call.1} parent=1 // pred_fallthru
      _
    // Predicated region
    $region22: #{tpu_custom_call.1} parent=1 // pred_check
      _
    $region23: #{tpu_custom_call.1} parent=1 // pred_check_branch
      %26 = sbr.rel (0) target = $region25
    $region24: #{tpu_custom_call.1} parent=1 // pred_region
      _
    $region25: #{tpu_custom_call.1} parent=1 // pred_fallthru
      _
    // Predicated region
    $region26: #{tpu_custom_call.1} parent=1 // pred_check
      _
    $region27: #{tpu_custom_call.1} parent=1 // pred_check_branch
      %28 = sbr.rel (0) target = $region29
    $region28: #{tpu_custom_call.1} parent=1 // pred_region
      _
    $region29: #{tpu_custom_call.1} parent=1 // pred_fallthru
      _
    // Predicated region
    $region30: #{tpu_custom_call.1} parent=1 // pred_check
      _
    $region31: #{tpu_custom_call.1} parent=1 // pred_check_branch
      %30 = sbr.rel (0) target = $region33
    $region32: #{tpu_custom_call.1} parent=1 // pred_region
      _
    $region33: #{tpu_custom_call.1} parent=1 // pred_fallthru
      _
    // Predicated region
    $region34: #{tpu_custom_call.1} parent=1 // pred_check
      _
    $region35: #{tpu_custom_call.1} parent=1 // pred_check_branch
      %32 = sbr.rel (0) target = $region37
    $region36: #{tpu_custom_call.1} parent=1 // pred_region
      _
    $region37: #{tpu_custom_call.1} parent=1 // pred_fallthru
      _
    %v34 = vld [vmem:[%s0] sm:$0xff]
    %v35 = vld [vmem:[%s1] sm:$0xff]
    %v36 = vld [vmem:[%s1 + $0x8] sm:$0xff]
    %v37 = vld [vmem:[%s1 + $0x10] sm:$0xff]
    %v38 = vld [vmem:[%s1 + $0x18] sm:$0xff]
    %v39 = vld [vmem:[%s2] sm:$0xff]
    %v40 = vld [vmem:[%s2 + $0x8] sm:$0xff]
    %v41 = vld [vmem:[%s2 + $0x10] sm:$0xff]
    %v42 = vld [vmem:[%s2 + $0x18] sm:$0xff]
    %44 = vset.pattern.permute.xlu0 0
    %45 = vperm.xlu0 %44, %v39
    %v46 = vpop.permute.xlu0 %45
    %49 = vset.pattern.permute.xlu0 0
    %50 = vperm.xlu0 %49, %v40
    %v51 = vpop.permute.xlu0 %50
    %54 = vset.pattern.permute.xlu0 0
    %55 = vperm.xlu0 %54, %v41
    %v56 = vpop.permute.xlu0 %55
    %59 = vset.pattern.permute.xlu0 0
    %60 = vperm.xlu0 %59, %v42
    %v61 = vpop.permute.xlu0 %60
    %vm63 = vcmask 64512
    %v65 = vsel %vm63, %v35, 0
    %v68 = vsel %vm63, %v36, 0
    %v71 = vsel %vm63, %v37, 0
    %v74 = vsel %vm63, %v38, 0
    %v77 = vsel %vm63, %v34, 0
    %79 = vmatprep.subr.mxu0 0.0
    %80 = vmatpush1.xpose.msra.mxu0 %v77
    %81 = vmatprep.subr.mxu0 0.0
    %82 = vmatpush1.xpose.msra.mxu0 0.0
    %83 = vmatprep.subr.mxu0 0.0
    %84 = vmatpush1.xpose.msra.mxu0 0.0
    %85 = vmatprep.subr.mxu0 0.0
    %86 = vmatpush1.xpose.msra.mxu0 0.0
    %87 = vmatprep.subr.mxu0 0.0
    %88 = vmatpush1.xpose.msra.mxu0 0.0
    %89 = vmatprep.subr.mxu0 0.0
    %90 = vmatpush1.xpose.msra.mxu0 0.0
    %91 = vmatprep.subr.mxu0 0.0
    %92 = vmatpush1.xpose.msra.mxu0 0.0
    %93 = vmatprep.subr.mxu0 0.0
    %94 = vmatpush1.xpose.msra.mxu0 0.0
    %95 = vmatprep.subr.mxu0 0.0
    %96 = vmatpush1.xpose.msra.mxu0 0.0
    %97 = vmatprep.subr.mxu0 0.0
    %98 = vmatpush1.xpose.msra.mxu0 0.0
    %99 = vmatprep.subr.mxu0 0.0
    %100 = vmatpush1.xpose.msra.mxu0 0.0
    %101 = vmatprep.subr.mxu0 0.0
    %102 = vmatpush1.xpose.msra.mxu0 0.0
    %103 = vmatprep.subr.mxu0 0.0
    %104 = vmatpush1.xpose.msra.mxu0 0.0
    %105 = vmatprep.subr.mxu0 0.0
    %106 = vmatpush1.xpose.msra.mxu0 0.0
    %107 = vmatprep.subr.mxu0 0.0
    %108 = vmatpush1.xpose.msra.mxu0 0.0
    %109 = vmatprep.subr.mxu0 0.0
    %110 = vmatpush1.xpose.msra.mxu0 0.0
    %111 = vmatprep.subr.mxu0 0.0
    %112 = vmatpush1.xpose.msra.mxu0 0.0
    %113 = vmatprep.subr.mxu0 0.0
    %114 = vmatpush1.xpose.msra.mxu0 0.0
    %115 = vmatprep.subr.mxu0 0.0
    %116 = vmatpush1.xpose.msra.mxu0 0.0
    %117 = vmatprep.subr.mxu0 0.0
    %118 = vmatpush1.xpose.msra.mxu0 0.0
    %119 = vmatprep.subr.mxu0 0.0
    %120 = vmatpush1.xpose.msra.mxu0 0.0
    %121 = vmatprep.subr.mxu0 0.0
    %122 = vmatpush1.xpose.msra.mxu0 0.0
    %123 = vmatprep.subr.mxu0 0.0
    %124 = vmatpush1.xpose.msra.mxu0 0.0
    %125 = vmatprep.subr.mxu0 0.0
    %126 = vmatpush1.xpose.msra.mxu0 0.0
    %127 = vmatprep.subr.mxu0 0.0
    %128 = vmatpush1.xpose.msra.mxu0 0.0
    %129 = vmatprep.subr.mxu0 0.0
    %130 = vmatpush1.xpose.msra.mxu0 0.0
    %131 = vmatprep.subr.mxu0 0.0
    %132 = vmatpush1.xpose.msra.mxu0 0.0
    %133 = vmatprep.subr.mxu0 0.0
    %134 = vmatpush1.xpose.msra.mxu0 0.0
    %135 = vmatprep.subr.mxu0 0.0
    %136 = vmatpush1.xpose.msra.mxu0 0.0
    %137 = vmatprep.subr.mxu0 0.0
    %138 = vmatpush1.xpose.msra.mxu0 0.0
    %139 = vmatprep.subr.mxu0 0.0
    %140 = vmatpush1.xpose.msra.mxu0 0.0
    %141 = vmatprep.subr.mxu0 0.0
    %142 = vmatpush1.xpose.msra.mxu0 0.0
    %143 = vmatprep.mubr.f32.mxu0 0.0
    %144 = vmatmul.mubr.f32.gmra.mrb[0].mxu0 %v65
    %v145 = vpop.f32.mrb[0].mxu0
    %v146 = vadd.f32 %v46, %v145
    %v147 = vpop.f32.mrb[0].mxu0
    %148 = vmatprep.mubr.f32.mxu0 0.0
    %149 = vmatmul.mubr.f32.gmra.mrb[0].mxu0 %v68
    %v150 = vpop.f32.mrb[0].mxu0
    %v151 = vadd.f32 %v51, %v150
    %v152 = vpop.f32.mrb[0].mxu0
    %153 = vmatprep.mubr.f32.mxu0 0.0
    %154 = vmatmul.mubr.f32.gmra.mrb[0].mxu0 %v71
    %v155 = vpop.f32.mrb[0].mxu0
    %v156 = vadd.f32 %v56, %v155
    %v157 = vpop.f32.mrb[0].mxu0
    %158 = vmatprep.mubr.f32.mxu0 0.0
    %159 = vmatmul.mubr.f32.gmra.mrb[0].mxu0 %v74
    %v160 = vpop.f32.mrb[0].mxu0
    %v161 = vadd.f32 %v61, %v160
    %v162 = vpop.f32.mrb[0].mxu0
    %163 = vdwg.mxu0
    %v164 = vmax.f32 %v146, 0.0
    %v165 = vmax.f32 %v151, 0.0
    %v166 = vmax.f32 %v156, 0.0
    %v167 = vmax.f32 %v161, 0.0
    %v168 = vld [vmem:[%s3] sm:$0xf]
    %v169 = vld [vmem:[%s3 + $0x4] sm:$0xf]
    %v170 = vld [vmem:[%s3 + $0x8] sm:$0xf]
    %v171 = vld [vmem:[%s3 + $0xc] sm:$0xf]
    %v172 = vpack.c.bf16 %v165, %v164
    %v173 = vpack.c.bf16 %v167, %v166
    %v174 = vld [vmem:[%s4] sm:$0xff]
    %v175 = vld [vmem:[%s4 + $0x8] sm:$0xff]
    %v176 = vld [vmem:[%s4 + $0x10] sm:$0xff]
    %v177 = vld [vmem:[%s4 + $0x18] sm:$0xff]
    %179 = vset.pattern.permute.xlu0 0
    %180 = vperm.xlu0 %179, %v174
    %v181 = vpop.permute.xlu0 %180
    %184 = vset.pattern.permute.xlu0 0
    %185 = vperm.xlu0 %184, %v175
    %v186 = vpop.permute.xlu0 %185
    %189 = vset.pattern.permute.xlu0 0
    %190 = vperm.xlu0 %189, %v176
    %v191 = vpop.permute.xlu0 %190
    %194 = vset.pattern.permute.xlu0 0
    %195 = vperm.xlu0 %194, %v177
    %v196 = vpop.permute.xlu0 %195
    %v202 = vunpack.c.l.b16 %v168
    %v203 = vunpack.c.l.b16 %v169
    %v204 = vunpack.c.l.b16 %v170
    %v205 = vunpack.c.l.b16 %v171
    %v206 = vpack.c.b16 %v203, %v202
    %v207 = vpack.c.b16 %v205, %v204
    %vm208 = vcmask 261120
    %v210 = vsel %vm208, %v206, 0
    %v213 = vsel %vm208, %v207, 0
    %215 = vmatprep.subr.bf16.mxu0 0
    %216 = vmatpush1.bf16.msra.mxu0 %v172
    %217 = vmatprep.subr.bf16.mxu0 0
    %218 = vmatpush1.bf16.msra.mxu0 %v173
    %219 = vmatprep.subr.bf16.mxu0 0
    %220 = vmatpush1.bf16.msra.mxu0 0
    %221 = vmatprep.subr.bf16.mxu0 0
    %222 = vmatpush1.bf16.msra.mxu0 0
    %223 = vmatprep.subr.bf16.mxu0 0
    %224 = vmatpush1.bf16.msra.mxu0 0
    %225 = vmatprep.subr.bf16.mxu0 0
    %226 = vmatpush1.bf16.msra.mxu0 0
    %227 = vmatprep.subr.bf16.mxu0 0
    %228 = vmatpush1.bf16.msra.mxu0 0
    %229 = vmatprep.subr.bf16.mxu0 0
    %230 = vmatpush1.bf16.msra.mxu0 0
    %231 = vmatprep.subr.bf16.mxu0 0
    %232 = vmatpush1.bf16.msra.mxu0 0
    %233 = vmatprep.subr.bf16.mxu0 0
    %234 = vmatpush1.bf16.msra.mxu0 0
    %235 = vmatprep.subr.bf16.mxu0 0
    %236 = vmatpush1.bf16.msra.mxu0 0
    %237 = vmatprep.subr.bf16.mxu0 0
    %238 = vmatpush1.bf16.msra.mxu0 0
    %239 = vmatprep.subr.bf16.mxu0 0
    %240 = vmatpush1.bf16.msra.mxu0 0
    %241 = vmatprep.subr.bf16.mxu0 0
    %242 = vmatpush1.bf16.msra.mxu0 0
    %243 = vmatprep.subr.bf16.mxu0 0
    %244 = vmatpush1.bf16.msra.mxu0 0
    %245 = vmatprep.subr.bf16.mxu0 0
    %246 = vmatpush1.bf16.msra.mxu0 0
    %247 = vmatprep.mubr.bf16.mxu0 0
    %248 = vmatmul.mubr.bf16.gmra.mrb[0].mxu0 %v210
    %v249 = vpop.f32.mrb[0].mxu0
    %v250 = vadd.f32 %v181, %v249
    %v251 = vpop.f32.mrb[0].mxu0
    %v252 = vpop.f32.mrb[0].mxu0
    %v253 = vadd.f32 %v186, %v252
    %v254 = vpop.f32.mrb[0].mxu0
    %255 = vmatprep.mubr.bf16.mxu0 0
    %256 = vmatmul.mubr.bf16.gmra.mrb[0].mxu0 %v213
    %v257 = vpop.f32.mrb[0].mxu0
    %v258 = vadd.f32 %v191, %v257
    %v259 = vpop.f32.mrb[0].mxu0
    %v260 = vpop.f32.mrb[0].mxu0
    %v261 = vadd.f32 %v196, %v260
    %v262 = vpop.f32.mrb[0].mxu0
    %263 = vdwg.mxu0
    %v264 = vmax.f32 %v250, 0.0
    %v265 = vmax.f32 %v253, 0.0
    %v266 = vmax.f32 %v258, 0.0
    %v267 = vmax.f32 %v261, 0.0
    %v268 = vld [vmem:[%s5] sm:$0xf]
    %v269 = vld [vmem:[%s5 + $0x4] sm:$0xf]
    %v270 = vld [vmem:[%s5 + $0x8] sm:$0xf]
    %v271 = vld [vmem:[%s5 + $0xc] sm:$0xf]
    %v272 = vpack.c.bf16 %v265, %v264
    %v273 = vpack.c.bf16 %v267, %v266
    %v274 = vld [vmem:[%s6] sm:$0xff]
    %v275 = vld [vmem:[%s6 + $0x8] sm:$0xff]
    %v276 = vld [vmem:[%s6 + $0x10] sm:$0xff]
    %v277 = vld [vmem:[%s6 + $0x18] sm:$0xff]
    %279 = vset.pattern.permute.xlu0 0
    %280 = vperm.xlu0 %279, %v274
    %v281 = vpop.permute.xlu0 %280
    %284 = vset.pattern.permute.xlu0 0
    %285 = vperm.xlu0 %284, %v275
    %v286 = vpop.permute.xlu0 %285
    %289 = vset.pattern.permute.xlu0 0
    %290 = vperm.xlu0 %289, %v276
    %v291 = vpop.permute.xlu0 %290
    %294 = vset.pattern.permute.xlu0 0
    %295 = vperm.xlu0 %294, %v277
    %v296 = vpop.permute.xlu0 %295
    %v302 = vunpack.c.l.b16 %v268
    %v303 = vunpack.c.l.b16 %v269
    %v304 = vunpack.c.l.b16 %v270
    %v305 = vunpack.c.l.b16 %v271
    %v306 = vpack.c.b16 %v303, %v302
    %v307 = vpack.c.b16 %v305, %v304
    %v309 = vsel %vm208, %v306, 0
    %v312 = vsel %vm208, %v307, 0
    %314 = vmatprep.subr.bf16.mxu0 0
    %315 = vmatpush1.bf16.msra.mxu0 %v272
    %316 = vmatprep.subr.bf16.mxu0 0
    %317 = vmatpush1.bf16.msra.mxu0 %v273
    %318 = vmatprep.subr.bf16.mxu0 0
    %319 = vmatpush1.bf16.msra.mxu0 0
    %320 = vmatprep.subr.bf16.mxu0 0
    %321 = vmatpush1.bf16.msra.mxu0 0
    %322 = vmatprep.subr.bf16.mxu0 0
    %323 = vmatpush1.bf16.msra.mxu0 0
    %324 = vmatprep.subr.bf16.mxu0 0
    %325 = vmatpush1.bf16.msra.mxu0 0
    %326 = vmatprep.subr.bf16.mxu0 0
    %327 = vmatpush1.bf16.msra.mxu0 0
    %328 = vmatprep.subr.bf16.mxu0 0
    %329 = vmatpush1.bf16.msra.mxu0 0
    %330 = vmatprep.subr.bf16.mxu0 0
    %331 = vmatpush1.bf16.msra.mxu0 0
    %332 = vmatprep.subr.bf16.mxu0 0
    %333 = vmatpush1.bf16.msra.mxu0 0
    %334 = vmatprep.subr.bf16.mxu0 0
    %335 = vmatpush1.bf16.msra.mxu0 0
    %336 = vmatprep.subr.bf16.mxu0 0
    %337 = vmatpush1.bf16.msra.mxu0 0
    %338 = vmatprep.subr.bf16.mxu0 0
    %339 = vmatpush1.bf16.msra.mxu0 0
    %340 = vmatprep.subr.bf16.mxu0 0
    %341 = vmatpush1.bf16.msra.mxu0 0
    %342 = vmatprep.subr.bf16.mxu0 0
    %343 = vmatpush1.bf16.msra.mxu0 0
    %344 = vmatprep.subr.bf16.mxu0 0
    %345 = vmatpush1.bf16.msra.mxu0 0
    %346 = vmatprep.mubr.bf16.mxu0 0
    %347 = vmatmul.mubr.bf16.gmra.mrb[0].mxu0 %v309
    %v348 = vpop.f32.mrb[0].mxu0
    %v349 = vadd.f32 %v281, %v348
    %v350 = vpop.f32.mrb[0].mxu0
    %v351 = vpop.f32.mrb[0].mxu0
    %v352 = vadd.f32 %v286, %v351
    %v353 = vpop.f32.mrb[0].mxu0
    %354 = vmatprep.mubr.bf16.mxu0 0
    %355 = vmatmul.mubr.bf16.gmra.mrb[0].mxu0 %v312
    %v356 = vpop.f32.mrb[0].mxu0
    %v357 = vadd.f32 %v291, %v356
    %v358 = vpop.f32.mrb[0].mxu0
    %v359 = vpop.f32.mrb[0].mxu0
    %v360 = vadd.f32 %v296, %v359
    %v361 = vpop.f32.mrb[0].mxu0
    %362 = vdwg.mxu0
    %v363 = vmax.f32 %v349, 0.0
    %v364 = vmax.f32 %v352, 0.0
    %v365 = vmax.f32 %v357, 0.0
    %v366 = vmax.f32 %v360, 0.0
    %v367 = vld [vmem:[%s7] sm:$0x3]
    %v368 = vpack.c.bf16 %v364, %v363
    %v369 = vpack.c.bf16 %v366, %v365
    %v370 = vld [vmem:[%s8] sm:$0xf]
    %372 = vset.pattern.permute.xlu0 0
    %373 = vperm.xlu0 %372, %v370
    %v374 = vpop.permute.xlu0 %373
    %v377 = vsel %vm208, %v367, 0
    %379 = vmatprep.subr.bf16.mxu0 0
    %380 = vmatpush1.bf16.msra.mxu0 %v368
    %381 = vmatprep.subr.bf16.mxu0 0
    %382 = vmatpush1.bf16.msra.mxu0 %v369
    %383 = vmatprep.subr.bf16.mxu0 0
    %384 = vmatpush1.bf16.msra.mxu0 0
    %385 = vmatprep.subr.bf16.mxu0 0
    %386 = vmatpush1.bf16.msra.mxu0 0
    %387 = vmatprep.subr.bf16.mxu0 0
    %388 = vmatpush1.bf16.msra.mxu0 0
    %389 = vmatprep.subr.bf16.mxu0 0
    %390 = vmatpush1.bf16.msra.mxu0 0
    %391 = vmatprep.subr.bf16.mxu0 0
    %392 = vmatpush1.bf16.msra.mxu0 0
    %393 = vmatprep.subr.bf16.mxu0 0
    %394 = vmatpush1.bf16.msra.mxu0 0
    %395 = vmatprep.subr.bf16.mxu0 0
    %396 = vmatpush1.bf16.msra.mxu0 0
    %397 = vmatprep.subr.bf16.mxu0 0
    %398 = vmatpush1.bf16.msra.mxu0 0
    %399 = vmatprep.subr.bf16.mxu0 0
    %400 = vmatpush1.bf16.msra.mxu0 0
    %401 = vmatprep.subr.bf16.mxu0 0
    %402 = vmatpush1.bf16.msra.mxu0 0
    %403 = vmatprep.subr.bf16.mxu0 0
    %404 = vmatpush1.bf16.msra.mxu0 0
    %405 = vmatprep.subr.bf16.mxu0 0
    %406 = vmatpush1.bf16.msra.mxu0 0
    %407 = vmatprep.subr.bf16.mxu0 0
    %408 = vmatpush1.bf16.msra.mxu0 0
    %409 = vmatprep.subr.bf16.mxu0 0
    %410 = vmatpush1.bf16.msra.mxu0 0
    %411 = vmatprep.mubr.bf16.mxu0 0
    %412 = vmatmul.mubr.bf16.gmra.mrb[0].mxu0 %v377
    %v413 = vpop.f32.mrb[0].mxu0
    %v414 = vadd.f32 %v374, %v413
    %v415 = vpop.f32.mrb[0].mxu0
    %v416 = vpop.f32.mrb[0].mxu0
    %v417 = vpop.f32.mrb[0].mxu0
    %418 = vdwg.mxu0
    %vm419 = vcmask 60416
    %420 = vst.msk [vmem:[#allocation2] sm:$0xf] %vm419, %v414
    // Predicated region
    $region38: #{tpu_custom_call.1} parent=1 // pred_check
      _
    $region39: #{tpu_custom_call.1} parent=1 // pred_check_branch
      %422 = sbr.rel (0) target = $region41
    $region40: #{tpu_custom_call.1} parent=1 // pred_region
      %s424 = ssub.s32 64, 64
      %425 = vsyncadd [#allocation3], %s424
      %s427 = sshll.u32 [#allocation2], 4
      %s428 = int_to_ptr.vmem [resolvable:$true] %s427
      %430 = dma.vmem_to_hbm [thread:$0]  %s428, 64, %s9, [#allocation3]
    $region41: #{tpu_custom_call.1} parent=1 // pred_fallthru
      _
    // Predicated region
    $region42: #{tpu_custom_call.1} parent=1 // pred_check
      _
    $region43: #{tpu_custom_call.1} parent=1 // pred_check_branch
      %432 = sbr.rel (0) target = $region45
    $region44: #{tpu_custom_call.1} parent=1 // pred_region
      %433 = dma.done [#allocation3], 64
    $region45: #{tpu_custom_call.1} parent=1 // pred_fallthru
      _
    %434 = vsyncpa [#allocation3], 1

</llo_original>
